<compile_context>
chip_gen: v7x
topology: tpu7x:2x2x1
jax: 0.10.0
libtpu: 0.0.40
codegen_flags: <defaults>
</compile_context>

<pallas_src>
import jax
import jax.numpy as jnp
from jax.experimental import pallas as pl
from jax.experimental.pallas import tpu as pltpu

_LANE = 128


def _log2_kernel(x_ref, o_ref):
    # Elementwise log2 on the current VMEM tile.  Compute in f32: no-op for
    # f32 inputs, fuses int->float promotion for integer inputs, and safely
    # widens bf16/f16 (v5e's EUP has no bf16 path).  Cast lands in VPU slots
    # that have plenty of slack in a mem-bound kernel.
    o_ref[...] = jnp.log2(x_ref[...].astype(jnp.float32)).astype(o_ref.dtype)


def _round_up(a, m):
    return ((a + m - 1) // m) * m


def _chip_config():
    """Per-generation tuning knobs (perf only; safe conservative defaults)."""
    kind = ""
    try:
        kind = jax.devices()[0].device_kind.lower()
    except Exception:
        pass
    if "v7" in kind or "tpu7" in kind:
        # 3.2 TB/s HBM: bigger tiles amortize per-step overhead.  Raise the
        # scoped VMEM limit so the double-buffered ~6 MiB in + out tiles fit
        # comfortably (physical VMEM is 64 MiB, default scoped is 32 MiB).
        return {"tile_bytes": 6 * 1024 * 1024,
                "two_tc": True,
                "vmem_limit_bytes": 48 * 1024 * 1024}
    # v5e / v6e (single TensorCore): 2 MiB tiles already saturate HBM and the
    # 2x(in+out) working set stays inside the default scoped VMEM limit.
    return {"tile_bytes": 2 * 1024 * 1024,
            "two_tc": False,
            "vmem_limit_bytes": None}


def log2_pallas(x):
    orig_shape = x.shape

    # torch.log2 promotes integer/bool inputs to float32.  bool is cast here
    # (packed-bool VMEM tiles are awkward); integer promotion is fused into
    # the kernel so it costs no extra HBM pass.
    if x.dtype == jnp.bool_:
        x = x.astype(jnp.float32)
    in_dtype = x.dtype
    out_dtype = in_dtype if jnp.issubdtype(in_dtype, jnp.floating) else jnp.float32

    # Zero-size tensor (the case this test is named after): nothing to compute.
    if x.size == 0:
        return jnp.empty(orig_shape, dtype=out_dtype)

    in_itemsize = jnp.dtype(in_dtype).itemsize
    out_itemsize = jnp.dtype(out_dtype).itemsize
    itemsize_max = max(in_itemsize, out_itemsize)
    # Native sublane multiple covering both the input and output tiles.
    sub = max(8, 32 // in_itemsize, 32 // out_itemsize)

    cfg = _chip_config()
    tile_bytes = cfg["tile_bytes"]

    flat = x.reshape(-1)
    n = flat.shape[0]

    compiler_params = pltpu.CompilerParams(
        dimension_semantics=("parallel",),
        vmem_limit_bytes=cfg["vmem_limit_bytes"])
    cost = pl.CostEstimate(
        flops=0,
        transcendentals=n,
        bytes_accessed=n * (in_itemsize + out_itemsize))

    if n % _LANE == 0:
        # Lane-dense 2D path: (rows, 128) slab with large row-tiles.  Any
        # ragged last block is masked by Pallas -- no pad, no trailing slice.
        x2 = flat.reshape(-1, _LANE)
        rows = x2.shape[0]
        cap_rows = max(sub, (tile_bytes // (_LANE * itemsize_max)) // sub * sub)
        block_rows = min(rows, cap_rows)
        n_blocks = pl.cdiv(rows, block_rows)

        if cfg["two_tc"]:
            # Keep both TensorCores busy with a warm pipeline: prefer an even
            # number of grid steps and >= 4 steps when there is enough work.
            min_blocks = 4 if rows >= 4 * sub else (2 if rows >= 2 * sub else 1)
            if n_blocks < min_blocks:
                block_rows = max(sub, _round_up(pl.cdiv(rows, min_blocks), sub))
                n_blocks = pl.cdiv(rows, block_rows)
            if n_blocks > 1 and n_blocks % 2 == 1:
                block_rows = max(sub,
                                 _round_up(pl.cdiv(rows, n_blocks + 1), sub))
                n_blocks = pl.cdiv(rows, block_rows)

        out2 = pl.pallas_call(
            _log2_kernel,
            out_shape=jax.ShapeDtypeStruct((rows, _LANE), out_dtype),
            grid=(n_blocks,),
            in_specs=[pl.BlockSpec((block_rows, _LANE), lambda i: (i, 0))],
            out_specs=pl.BlockSpec((block_rows, _LANE), lambda i: (i, 0)),
            compiler_params=compiler_params,
            cost_estimate=cost,
        )(x2)
        return out2.reshape(orig_shape)

    # Ragged 1D path (flat size not a multiple of 128): run directly on the
    # flat array; Pallas masks the partial last block.  No pad / slice copies.
    chunk = sub * _LANE
    cap_elems = max(chunk, (tile_bytes // itemsize_max) // chunk * chunk)
    if n <= cap_elems:
        block_elems = n          # single full-array block (always legal)
        n_blocks = 1
    else:
        block_elems = cap_elems  # multiple of 8*128; last block is ragged
        n_blocks = pl.cdiv(n, block_elems)

    out1 = pl.pallas_call(
        _log2_kernel,
        out_shape=jax.ShapeDtypeStruct((n,), out_dtype),
        grid=(n_blocks,),
        in_specs=[pl.BlockSpec((block_elems,), lambda i: (i,))],
        out_specs=pl.BlockSpec((block_elems,), lambda i: (i,)),
        compiler_params=compiler_params,
        cost_estimate=cost,
    )(flat)
    return out1.reshape(orig_shape)


if __name__ == "__main__":
    key = jax.random.PRNGKey(0)

    # Primary case from the test name: a zero-size tensor.
    x_zero = jnp.empty((0, 4, 16, 16), dtype=jnp.float32)
    out_zero = jax.block_until_ready(log2_pallas(x_zero))
    assert out_zero.shape == (0, 4, 16, 16) and out_zero.dtype == jnp.float32

    # Non-empty, lane-aligned case (2D fast path).
    x = jax.random.uniform(key, (2, 4, 16, 16), dtype=jnp.float32,
                           minval=0.1, maxval=4.0)
    out = jax.block_until_ready(log2_pallas(x))
    ref = jnp.log2(x)
    assert out.shape == x.shape and out.dtype == x.dtype
    assert jnp.allclose(out, ref, rtol=1e-6, atol=1e-6), "mismatch vs jnp.log2"

    # Non-128-divisible case (ragged 1D path: no pad, no trailing slice).
    x_odd = jax.random.uniform(jax.random.PRNGKey(1), (3, 5, 7),
                               dtype=jnp.float32, minval=0.1, maxval=4.0)
    out_odd = jax.block_until_ready(log2_pallas(x_odd))
    assert jnp.allclose(out_odd, jnp.log2(x_odd), rtol=1e-6, atol=1e-6)

    # Integer input: promotion to float32 is fused into the kernel.
    x_int = jnp.arange(1, 129, dtype=jnp.int32).reshape(4, 32)
    out_int = jax.block_until_ready(log2_pallas(x_int))
    assert out_int.dtype == jnp.float32
    assert jnp.allclose(out_int, jnp.log2(x_int.astype(jnp.float32)),
                        rtol=1e-6, atol=1e-6)

    print("KERNEL_OK")
</pallas_src>

<mosaic_0001>
module attributes {stable_mosaic.version = 11 : i64} {
  func.func @_log2_kernel(%arg0: i32, %arg1: memref<16x128xf32, #tpu.memory_space<vmem>>, %arg2: memref<16x128xf32, #tpu.memory_space<vmem>>) attributes {dimension_semantics = [#tpu.dimension_semantics<parallel>], iteration_bounds = array<i64: 1>, scalar_prefetch = 0 : i64, scratch_operands = 0 : i64, tpu.core_type = #tpu.core_type<tc>, window_params = [{transform_indices = @transform_0, window_bounds = array<i64: 16, 128>}, {transform_indices = @transform_1, window_bounds = array<i64: 16, 128>}]} {
    %c0 = arith.constant 0 : index
    %c0_0 = arith.constant 0 : index
    %0 = vector.load %arg1[%c0, %c0_0] : memref<16x128xf32, #tpu.memory_space<vmem>>, vector<16x128xf32>
    %1 = math.log %0 : vector<16x128xf32>
    %cst = arith.constant 2.000000e+00 : f32
    %2 = math.log %cst : f32
    %3 = vector.broadcast %2 : f32 to vector<16x128xf32>
    %4 = arith.divf %1, %3 : vector<16x128xf32>
    %c0_1 = arith.constant 0 : index
    %c0_2 = arith.constant 0 : index
    %5 = vector.load %arg2[%c0_1, %c0_2] : memref<16x128xf32, #tpu.memory_space<vmem>>, vector<16x128xf32>
    tpu.vector_store %arg2[%c0_1, %c0_2], %4 {strides = array<i32>} : memref<16x128xf32, #tpu.memory_space<vmem>>, vector<16x128xf32>,
    return
  }
  func.func @transform_0(%arg0: i32) -> (i32, i32) {
    %c0_i32 = arith.constant 0 : i32
    %c0_i32_0 = arith.constant 0 : i32
    return %arg0, %c0_i32 : i32, i32
  }
  func.func @transform_1(%arg0: i32) -> (i32, i32) {
    %c0_i32 = arith.constant 0 : i32
    %c0_i32_0 = arith.constant 0 : i32
    return %arg0, %c0_i32 : i32, i32
  }
}

</mosaic_0001>

<llo_original>
// kernel: tpu_custom_call.1
$region0: #{tpu_custom_call.1}
  #allocation0 [shape = 'u32[]', space=smem, size = 0x4, offset = 0x4, fixed_abs, tag = 'smem constant byte address 0x4 - core index']
  #allocation1 [shape = 'u32[144,128]{1,0:T(1,128)}', space=vmem, size = 0x12000, scoped, tag = 'internal scratch']
  %s0 = inlined_call_operand.hbm [shape: f32[16,128], index: 0, kind: input, shape index: {}]
  %s1 = inlined_call_operand.hbm [shape: f32[16,128], index: 1, kind: output, shape index: {}]
  %s2 = sld [smem:[#allocation0]]
  $region18: #{tpu_custom_call.1} parent=0
    _
  %s4 = ssub.s32 1, %s2
  %s5 = scalar_select 0, %s4, %s2
  $region1: #{tpu_custom_call.1} parent=0
    #allocation2 [shape = 'u8[8192]{0}', space=vmem, size = 0x2000, scoped, tag = 'input window, operand 0, single buffered']
    #allocation3 [shape = 's32[1]{0}', space=sflag, size = 0x4, scoped, tag = 'scoped memory for tpu_custom_call.1']
    #allocation4 [shape = 's32[1]{0}', space=sflag, size = 0x4, scoped, tag = 'scoped memory for tpu_custom_call.1']
    #allocation5 [shape = 'u8[8192]{0}', space=vmem, size = 0x2000, scoped, tag = 'output window, operand 0, single buffered']
    %6 = vsyncpa [#allocation3], 0
    %7 = vsyncpa [#allocation4], 0
    // Predicated region
    $region2: #{tpu_custom_call.1} parent=1 // pred_check
      _
    $region3: #{tpu_custom_call.1} parent=1 // pred_check_branch
      %9 = sbr.rel (0) target = $region5
    $region4: #{tpu_custom_call.1} parent=1 // pred_region
      %s11 = ssub.s32 256, 256
      %12 = vsyncadd [#allocation3], %s11
      %s13 = sshll.u32 [#allocation2], 4
      %s14 = int_to_ptr.vmem [resolvable:$true] %s13
      %19 = dma.hbm_to_vmem [thread:$0]  %s0, 256, %s14, [#allocation3], 128, 128, 8
    $region5: #{tpu_custom_call.1} parent=1 // pred_fallthru
      _
    // Predicated region
    $region6: #{tpu_custom_call.1} parent=1 // pred_check
      _
    $region7: #{tpu_custom_call.1} parent=1 // pred_check_branch
      %21 = sbr.rel (0) target = $region9
    $region8: #{tpu_custom_call.1} parent=1 // pred_region
      %22 = dma.done [#allocation3], 256
    $region9: #{tpu_custom_call.1} parent=1 // pred_fallthru
      _
    %v23 = vld [vmem:[#allocation2] sm:$0xff]
    %v24 = vld [vmem:[#allocation2 + $0x8] sm:$0xff]
    %v25 = vlog2.pop %v23
    %v26 = vmul.f32 %v25, 0.6931472
    %v27 = vlog2.pop %v24
    %v28 = vmul.f32 %v27, 0.6931472
    %v29 = vrcp.pop 0.6931472
    %v30 = vmul.f32 %v26, %v29
    %v31 = vmul.f32 %v28, %v29
    %32 = vst [vmem:[#allocation5] sm:$0xff] %v30
    %33 = vst [vmem:[#allocation5 + $0x8] sm:$0xff] %v31
    // Predicated region
    $region10: #{tpu_custom_call.1} parent=1 // pred_check
      _
    $region11: #{tpu_custom_call.1} parent=1 // pred_check_branch
      %35 = sbr.rel (0) target = $region13
    $region12: #{tpu_custom_call.1} parent=1 // pred_region
      %s37 = ssub.s32 256, 256
      %38 = vsyncadd [#allocation4], %s37
      %s39 = sshll.u32 [#allocation5], 4
      %s40 = int_to_ptr.vmem [resolvable:$true] %s39
      %45 = dma.vmem_to_hbm [thread:$0]  %s40, 256, %s1, [#allocation4], 128, 128, 8
    $region13: #{tpu_custom_call.1} parent=1 // pred_fallthru
      _
    // Predicated region
    $region14: #{tpu_custom_call.1} parent=1 // pred_check
      _
    $region15: #{tpu_custom_call.1} parent=1 // pred_check_branch
      %47 = sbr.rel (0) target = $region17
    $region16: #{tpu_custom_call.1} parent=1 // pred_region
      %48 = dma.done [#allocation4], 256
    $region17: #{tpu_custom_call.1} parent=1 // pred_fallthru
      _
    %49 = vsyncpa [#allocation3], 1
    %50 = vsyncpa [#allocation4], 1

</llo_original>
